<compile_context>
chip_gen: v7x
topology: tpu7x:2x2x1
jax: 0.10.0
libtpu: 0.0.40
codegen_flags: <defaults>
</compile_context>

<pallas_src>
import jax
import jax.numpy as jnp
from jax.experimental import pallas as pl
from jax.experimental.pallas import tpu as pltpu

EPS = 1e-7
WIDE = 1024        # lane-dense slab width (8 vregs wide)
ACC_ROWS = 8       # accumulator height (one vreg of sublanes)


def _cdiv(a, b):
    return -(-a // b)


# ---------------------------------------------------------------------------
# Generation-aware configuration (tile cap, scoped-VMEM limit, TensorCores).
# ---------------------------------------------------------------------------
_CFG = None


def _probe_core_parallel():
    """Tiny compile probing CORE_PARALLEL support (v7x two-TensorCore split)."""
    try:
        def _k(x_ref, o_ref):
            o_ref[...] = x_ref[...] + 1.0

        f = pl.pallas_call(
            _k,
            out_shape=jax.ShapeDtypeStruct((16, 128), jnp.float32),
            grid=(2,),
            in_specs=[pl.BlockSpec((8, 128), lambda p: (p, 0))],
            out_specs=pl.BlockSpec((8, 128), lambda p: (p, 0)),
            compiler_params=pltpu.CompilerParams(
                dimension_semantics=(pltpu.CORE_PARALLEL,)),
        )
        with jax.ensure_compile_time_eval():
            jax.block_until_ready(f(jnp.zeros((16, 128), jnp.float32)))
        return True
    except Exception:
        return False


def _get_cfg():
    global _CFG
    if _CFG is not None:
        return _CFG
    kind = ""
    try:
        dev = jax.devices()[0]
        if dev.platform == "tpu":
            kind = str(getattr(dev, "device_kind", "")).lower()
    except Exception:
        kind = ""

    if any(t in kind for t in ("v5 lite", "v5e", "v6 lite", "v6e")):
        # v5e / v6e: 1 TensorCore, 128 MiB physical VMEM -> big blocks.
        # Inputs: 2 bufs x (4 MiB logits + <=4 MiB mask) = <=16 MiB << 64 MiB.
        _CFG = dict(cap_rows=1024, vmem=64 * 1024 * 1024, cores=1)
    elif "7" in kind:
        # v7x: 2 TensorCores, 64 MiB physical VMEM (32 MiB scoped default).
        # Inputs: 2 bufs x (2 MiB logits + <=2 MiB mask) = <=8 MiB << 32 MiB.
        cores = 2 if _probe_core_parallel() else 1
        _CFG = dict(cap_rows=512, vmem=32 * 1024 * 1024, cores=cores)
    else:
        # Unknown / other generation: conservative tiles.
        _CFG = dict(cap_rows=512, vmem=32 * 1024 * 1024, cores=1)
    return _CFG


# ---------------------------------------------------------------------------
# Fused (threshold in logit space) + global-dice partial-sum kernel.
#   grid = (n_par, n_inner); the three outputs double as per-partition
#   (8, WIDE) element-wise accumulators, resident across the inner axis.
# ---------------------------------------------------------------------------
def _make_dice_kernel(block_rows, n_inner, nb, valid_rows,
                      needs_row_mask, needs_gate):
    g = block_rows // ACC_ROWS

    def kernel(thr_ref, x_ref, m_ref, inter_ref, sp_ref, sm_ref):
        i = pl.program_id(1)

        # Outputs act as cross-step accumulators (same block for every i).
        @pl.when(i == 0)
        def _init():
            inter_ref[...] = jnp.zeros_like(inter_ref)
            sp_ref[...] = jnp.zeros_like(sp_ref)
            sm_ref[...] = jnp.zeros_like(sm_ref)

        thr = thr_ref[0]                          # threshold in LOGIT space
        linear = pl.program_id(0) * n_inner + i   # linear block index

        def _accumulate():
            x = x_ref[...].astype(jnp.float32)    # (block_rows, WIDE)
            m = m_ref[...].astype(jnp.float32)    # narrow dtypes cast on-chip
            gt = x > thr                          # fused sigmoid + threshold
            if needs_row_mask:                    # partial last block (static)
                rid = (linear * block_rows +
                       jax.lax.broadcasted_iota(jnp.int32,
                                                (block_rows, WIDE), 0))
                valid = rid < valid_rows
                gt = jnp.logical_and(gt, valid)
                m = jnp.where(valid, m, 0.0)
            # 1 cmp + 2 selects + 3 adds per element; the (g, 8, WIDE) axis-0
            # sums are pure VALU adds into the resident output accumulators
            # (splits the sublane dim at multiples of 8 -> free relayout).
            shape3 = (g, ACC_ROWS, WIDE)
            inter_ref[...] += jnp.where(gt, m, 0.0).reshape(shape3).sum(axis=0)
            sp_ref[...] += jnp.where(gt, 1.0, 0.0).reshape(shape3).sum(axis=0)
            sm_ref[...] += m.reshape(shape3).sum(axis=0)
            # TODO(synk): if a v5e bundle dump shows these intermediates being
            # materialized as (block_rows, WIDE) VMEM temporaries (binding the
            # single vst slot), strip-mine this region into (8, WIDE) slices
            # carried through a lax.fori_loop.

        if needs_gate:
            # The grid was padded so both cores run the same #steps; pad steps
            # fetch a clamped (valid) block but contribute nothing.
            pl.when(linear < nb)(_accumulate)
        else:
            _accumulate()

    return kernel


def _run_dice_kernel(x2, m2, thr):
    """x2 / m2: (rows, WIDE) slabs, rows a multiple of ACC_ROWS."""
    rows = x2.shape[0]
    cfg = _get_cfg()
    cap, cores = cfg["cap_rows"], cfg["cores"]

    if rows <= cap:
        block_rows, n_par, n_inner, nb = rows, 1, 1, 1
    else:
        block_rows = cap
        nb = _cdiv(rows, cap)
        n_par = cores if (cores > 1 and nb >= cores) else 1
        n_inner = _cdiv(nb, n_par)

    needs_row_mask = (rows % block_rows) != 0       # partial last block
    needs_gate = (n_par * n_inner) != nb            # padded per-core grid

    def xm_index(p, i):
        b = p * n_inner + i
        if needs_gate:
            b = jnp.minimum(b, nb - 1)              # keep the DMA in bounds
        return (b, 0)

    row_spec = pl.BlockSpec((block_rows, WIDE), xm_index)
    out_spec = pl.BlockSpec((ACC_ROWS, WIDE), lambda p, i: (p, 0))
    out_sds = jax.ShapeDtypeStruct((n_par * ACC_ROWS, WIDE), jnp.float32)

    dims = ((pltpu.CORE_PARALLEL, pltpu.ARBITRARY) if n_par > 1
            else (pltpu.ARBITRARY, pltpu.ARBITRARY))

    kernel = _make_dice_kernel(block_rows, n_inner, nb, rows,
                               needs_row_mask, needs_gate)
    return pl.pallas_call(
        kernel,
        out_shape=(out_sds, out_sds, out_sds),
        grid=(n_par, n_inner),
        in_specs=[
            pl.BlockSpec(memory_space=pltpu.MemorySpace.SMEM),  # threshold
            row_spec,                                           # logits slab
            row_spec,                                           # mask slab
        ],
        out_specs=(out_spec, out_spec, out_spec),
        compiler_params=pltpu.CompilerParams(
            dimension_semantics=dims,
            vmem_limit_bytes=cfg["vmem"],
        ),
    )(thr.reshape(1), x2, m2)


def dice_partials_pallas(logits, mask, thr_logit):
    """(intersection, sum_pred, sum_mask) for one batch; threshold in logit space.

    The mask may be any dtype (bool/int8/uint8 recommended to keep HBM traffic
    low); it is cast to f32 only inside the kernel.
    """
    thr = jnp.asarray(thr_logit, jnp.float32)
    n = logits.size
    flat_x = logits.reshape(-1)
    flat_m = mask.reshape(-1)

    rows = (n // WIDE) // ACC_ROWS * ACC_ROWS       # slab rows (multiple of 8)
    main_n = rows * WIDE

    inter = jnp.float32(0.0)
    sp = jnp.float32(0.0)
    sm = jnp.float32(0.0)

    if rows > 0:
        # Reshape-only view (no jnp.concatenate / jnp.pad of the full volume).
        x_main = flat_x if main_n == n else flat_x[:main_n]
        m_main = flat_m if main_n == n else flat_m[:main_n]
        i_slab, p_slab, m_slab = _run_dice_kernel(
            x_main.reshape(rows, WIDE), m_main.reshape(rows, WIDE), thr)
        inter = inter + jnp.sum(i_slab)
        sp = sp + jnp.sum(p_slab)
        sm = sm + jnp.sum(m_slab)

    if main_n < n:
        # Ragged remainder (< 8192 elements): plain jnp, negligible cost.
        xt = flat_x[main_n:].astype(jnp.float32)
        mt = flat_m[main_n:].astype(jnp.float32)
        gt = xt > thr
        inter = inter + jnp.sum(jnp.where(gt, mt, 0.0))
        sp = sp + jnp.sum(gt.astype(jnp.float32))
        sm = sm + jnp.sum(mt)

    return inter, sp, sm


_dice_partials = jax.jit(dice_partials_pallas)


# ---------------------------------------------------------------------------
# Module-equivalent wrapper (stateful accumulation across batches is host glue)
# ---------------------------------------------------------------------------
class PercentileGlobalDiceCoefficientWithLogitsForPPE:
    """JAX/Pallas port of the PyTorch metric (forward semantics only).

    Caller contract: pass targets in a narrow dtype (bool / int8 / uint8) to
    keep the streaming dice pass memory traffic low; any dtype is accepted.
    """

    def __init__(self, report_name: str, percent: float):
        self.report_name = report_name
        self.percent = percent
        self.logit_list = []   # raw logits; sigmoid is fused into the kernel
        self.mask_list = []

    def __call__(self, batch, model_output, is_last_batch):
        self.logit_list.append(model_output)
        self.mask_list.append(batch["target"])
        if not is_last_batch:
            return None

        _get_cfg()   # resolve TPU config outside any jit trace

        # Threshold in LOGIT space: sigmoid is strictly monotonic, so the
        # selected element set matches the prob-space reference except for
        # float rounding exactly at the interpolated boundary order statistic.
        # TODO(synk): replace the sort-based jnp.quantile with a streaming
        # histogram / bisection percentile kernel for very large volumes.
        flats = [l.reshape(-1).astype(jnp.float32) for l in self.logit_list]
        flat_logits = flats[0] if len(flats) == 1 else jnp.concatenate(flats)
        thr_logit = jnp.quantile(flat_logits, self.percent)

        # Stream per-batch partial sums (no concat of full prob/mask volumes).
        # TODO(synk): fold same-shape batches into one pallas_call (extra batch
        # grid axis / lax.scan) to amortize dispatch for many small batches.
        inter = jnp.float32(0.0)
        sp = jnp.float32(0.0)
        sm = jnp.float32(0.0)
        for lg, mk in zip(self.logit_list, self.mask_list):
            bi, bp, bm = _dice_partials(lg, mk, thr_logit)
            inter = inter + bi
            sp = sp + bp
            sm = sm + bm

        union = jnp.maximum(sp + sm, EPS)       # torch.clamp(union, min=eps)
        dice = 2.0 * inter / union

        self.logit_list = []
        self.mask_list = []
        # Stand-in for ppe.reporting.report({self.report_name: dice}).
        return {self.report_name: dice}


# ---------------------------------------------------------------------------
# Pure-JAX reference + demo / self-check
# ---------------------------------------------------------------------------
def _reference_metric(logit_batches, mask_batches, percent):
    prob = jnp.concatenate(
        [jax.nn.sigmoid(l.astype(jnp.float32)).reshape(-1)
         for l in logit_batches])
    mask = jnp.concatenate(
        [m.reshape(-1) for m in mask_batches]).astype(jnp.float32)
    thr = jnp.quantile(prob, percent)
    pred = (prob > thr).astype(jnp.float32)
    inter = jnp.sum(pred * mask)
    union = jnp.maximum(jnp.sum(pred) + jnp.sum(mask), EPS)
    return 2.0 * inter / union


if __name__ == "__main__":
    _get_cfg()   # resolve generation config (and CORE_PARALLEL probe) eagerly

    key = jax.random.PRNGKey(0)
    k1, k2, k3, k4, k5, k6 = jax.random.split(key, 6)

    # Two small eval "batches" in NCHW layout; targets kept narrow (int8).
    logits0 = jax.random.normal(k1, (2, 4, 32, 32), jnp.float32)
    target0 = (jax.random.uniform(k2, (2, 4, 32, 32)) > 0.5).astype(jnp.int8)
    logits1 = jax.random.normal(k3, (3, 4, 32, 32), jnp.float32)
    target1 = (jax.random.uniform(k4, (3, 4, 32, 32)) > 0.5).astype(jnp.int8)

    metric = PercentileGlobalDiceCoefficientWithLogitsForPPE("val/dice", 0.7)
    out0 = metric({"target": target0}, logits0, is_last_batch=False)
    assert out0 is None
    out1 = metric({"target": target1}, logits1, is_last_batch=True)
    dice = jax.block_until_ready(out1["val/dice"])

    ref = jax.block_until_ready(
        _reference_metric([logits0, logits1], [target0, target1], 0.7))
    assert abs(float(dice) - float(ref)) < 1e-5, (float(dice), float(ref))

    # Extra self-check: multi-block grid, partial last block (row mask) and the
    # ragged jnp tail, validated against a pure-jnp partial-sum computation.
    xb = jax.random.normal(k5, (1, 2, 600, 1000), jnp.float32)
    mb = (jax.random.uniform(k6, (1, 2, 600, 1000)) > 0.5).astype(jnp.int8)
    thr = jnp.float32(0.25)
    pi, pp, pm = jax.block_until_ready(_dice_partials(xb, mb, thr))
    xf = xb.reshape(-1)
    mf = mb.reshape(-1).astype(jnp.float32)
    gt = xf > thr
    ri = jnp.sum(jnp.where(gt, mf, 0.0))
    rp = jnp.sum(gt.astype(jnp.float32))
    rm = jnp.sum(mf)
    assert abs(float(pi - ri)) < 1e-3, (float(pi), float(ri))
    assert abs(float(pp - rp)) < 1e-3, (float(pp), float(rp))
    assert abs(float(pm - rm)) < 1e-3, (float(pm), float(rm))

    print("KERNEL_OK")
</pallas_src>

<mosaic_0001>
module attributes {stable_mosaic.version = 11 : i64} {
  func.func @kernel(%arg0: i32, %arg1: i32, %arg2: memref<1xf32, #tpu.memory_space<smem>>, %arg3: memref<8x1024xf32, #tpu.memory_space<vmem>>, %arg4: memref<8x1024xi8, #tpu.memory_space<vmem>>, %arg5: memref<8x1024xf32, #tpu.memory_space<vmem>>, %arg6: memref<8x1024xf32, #tpu.memory_space<vmem>>, %arg7: memref<8x1024xf32, #tpu.memory_space<vmem>>) attributes {dimension_semantics = [#tpu.dimension_semantics<arbitrary>, #tpu.dimension_semantics<arbitrary>], iteration_bounds = array<i64: 1, 1>, scalar_prefetch = 0 : i64, scratch_operands = 0 : i64, tpu.core_type = #tpu.core_type<tc>, window_params = [{transform_indices = @transform_0, window_bounds = array<i64: 1>}, {transform_indices = @transform_1, window_bounds = array<i64: 8, 1024>}, {transform_indices = @transform_2, window_bounds = array<i64: 8, 1024>}, {transform_indices = @transform_3, window_bounds = array<i64: 8, 1024>}, {transform_indices = @transform_4, window_bounds = array<i64: 8, 1024>}, {transform_indices = @transform_5, window_bounds = array<i64: 8, 1024>}]} {
    %c0_i32 = arith.constant 0 : i32
    %0 = arith.cmpi eq, %arg1, %c0_i32 : i32
    %1 = arith.extui %0 : i1 to i32
    %c0_i32_0 = arith.constant 0 : i32
    %2 = arith.cmpi ne, %1, %c0_i32_0 : i32
    scf.if %2 {
      %cst_22 = arith.constant 0.000000e+00 : f32
      %29 = vector.broadcast %cst_22 : f32 to vector<8x1024xf32>
      %c0_23 = arith.constant 0 : index
      %c0_24 = arith.constant 0 : index
      %30 = vector.load %arg5[%c0_23, %c0_24] : memref<8x1024xf32, #tpu.memory_space<vmem>>, vector<8x1024xf32>
      tpu.vector_store %arg5[%c0_23, %c0_24], %29 {strides = array<i32>} : memref<8x1024xf32, #tpu.memory_space<vmem>>, vector<8x1024xf32>,
      %cst_25 = arith.constant 0.000000e+00 : f32
      %31 = vector.broadcast %cst_25 : f32 to vector<8x1024xf32>
      %c0_26 = arith.constant 0 : index
      %c0_27 = arith.constant 0 : index
      %32 = vector.load %arg6[%c0_26, %c0_27] : memref<8x1024xf32, #tpu.memory_space<vmem>>, vector<8x1024xf32>
      tpu.vector_store %arg6[%c0_26, %c0_27], %31 {strides = array<i32>} : memref<8x1024xf32, #tpu.memory_space<vmem>>, vector<8x1024xf32>,
      %cst_28 = arith.constant 0.000000e+00 : f32
      %33 = vector.broadcast %cst_28 : f32 to vector<8x1024xf32>
      %c0_29 = arith.constant 0 : index
      %c0_30 = arith.constant 0 : index
      %34 = vector.load %arg7[%c0_29, %c0_30] : memref<8x1024xf32, #tpu.memory_space<vmem>>, vector<8x1024xf32>
      tpu.vector_store %arg7[%c0_29, %c0_30], %33 {strides = array<i32>} : memref<8x1024xf32, #tpu.memory_space<vmem>>, vector<8x1024xf32>,
    } else {
    }
    %c0 = arith.constant 0 : index
    %3 = memref.load %arg2[%c0] : memref<1xf32, #tpu.memory_space<smem>>
    %c0_1 = arith.constant 0 : index
    %c0_2 = arith.constant 0 : index
    %4 = vector.load %arg3[%c0_1, %c0_2] : memref<8x1024xf32, #tpu.memory_space<vmem>>, vector<8x1024xf32>
    %c0_3 = arith.constant 0 : index
    %c0_4 = arith.constant 0 : index
    %5 = vector.load %arg4[%c0_3, %c0_4] : memref<8x1024xi8, #tpu.memory_space<vmem>>, vector<8x1024xi8>
    %6 = arith.sitofp %5 : vector<8x1024xi8> to vector<8x1024xf32>
    %7 = vector.broadcast %3 : f32 to vector<8x1024xf32>
    %8 = arith.cmpf ogt, %4, %7 : vector<8x1024xf32>
    %c0_5 = arith.constant 0 : index
    %c0_6 = arith.constant 0 : index
    %9 = vector.load %arg5[%c0_5, %c0_6] : memref<8x1024xf32, #tpu.memory_space<vmem>>, vector<8x1024xf32>
    %cst = arith.constant 0.000000e+00 : f32
    %10 = vector.broadcast %cst : f32 to vector<8x1024xf32>
    %11 = arith.select %8, %6, %10 : vector<8x1024xi1>, vector<8x1024xf32>
    %12 = vector.shape_cast %11 : vector<8x1024xf32> to vector<1x8x1024xf32>
    %cst_7 = arith.constant dense<0.000000e+00> : vector<8x1024xf32>
    %13 = vector.multi_reduction <add>, %12, %cst_7 [0] : vector<1x8x1024xf32> to vector<8x1024xf32>
    %14 = arith.addf %9, %13 : vector<8x1024xf32>
    %c0_8 = arith.constant 0 : index
    %c0_9 = arith.constant 0 : index
    %15 = vector.load %arg5[%c0_8, %c0_9] : memref<8x1024xf32, #tpu.memory_space<vmem>>, vector<8x1024xf32>
    tpu.vector_store %arg5[%c0_8, %c0_9], %14 {strides = array<i32>} : memref<8x1024xf32, #tpu.memory_space<vmem>>, vector<8x1024xf32>,
    %c0_10 = arith.constant 0 : index
    %c0_11 = arith.constant 0 : index
    %16 = vector.load %arg6[%c0_10, %c0_11] : memref<8x1024xf32, #tpu.memory_space<vmem>>, vector<8x1024xf32>
    %cst_12 = arith.constant 1.000000e+00 : f32
    %cst_13 = arith.constant 0.000000e+00 : f32
    %17 = vector.broadcast %cst_12 : f32 to vector<8x1024xf32>
    %18 = vector.broadcast %cst_13 : f32 to vector<8x1024xf32>
    %19 = arith.select %8, %17, %18 : vector<8x1024xi1>, vector<8x1024xf32>
    %20 = vector.shape_cast %19 : vector<8x1024xf32> to vector<1x8x1024xf32>
    %cst_14 = arith.constant dense<0.000000e+00> : vector<8x1024xf32>
    %21 = vector.multi_reduction <add>, %20, %cst_14 [0] : vector<1x8x1024xf32> to vector<8x1024xf32>
    %22 = arith.addf %16, %21 : vector<8x1024xf32>
    %c0_15 = arith.constant 0 : index
    %c0_16 = arith.constant 0 : index
    %23 = vector.load %arg6[%c0_15, %c0_16] : memref<8x1024xf32, #tpu.memory_space<vmem>>, vector<8x1024xf32>
    tpu.vector_store %arg6[%c0_15, %c0_16], %22 {strides = array<i32>} : memref<8x1024xf32, #tpu.memory_space<vmem>>, vector<8x1024xf32>,
    %c0_17 = arith.constant 0 : index
    %c0_18 = arith.constant 0 : index
    %24 = vector.load %arg7[%c0_17, %c0_18] : memref<8x1024xf32, #tpu.memory_space<vmem>>, vector<8x1024xf32>
    %25 = vector.shape_cast %6 : vector<8x1024xf32> to vector<1x8x1024xf32>
    %cst_19 = arith.constant dense<0.000000e+00> : vector<8x1024xf32>
    %26 = vector.multi_reduction <add>, %25, %cst_19 [0] : vector<1x8x1024xf32> to vector<8x1024xf32>
    %27 = arith.addf %24, %26 : vector<8x1024xf32>
    %c0_20 = arith.constant 0 : index
    %c0_21 = arith.constant 0 : index
    %28 = vector.load %arg7[%c0_20, %c0_21] : memref<8x1024xf32, #tpu.memory_space<vmem>>, vector<8x1024xf32>
    tpu.vector_store %arg7[%c0_20, %c0_21], %27 {strides = array<i32>} : memref<8x1024xf32, #tpu.memory_space<vmem>>, vector<8x1024xf32>,
    return
  }
  func.func @transform_0(%arg0: i32, %arg1: i32) -> i32 {
    %c0_i32 = arith.constant 0 : i32
    %c0_i32_0 = arith.constant 0 : i32
    return %c0_i32 : i32
  }
  func.func @transform_1(%arg0: i32, %arg1: i32) -> (i32, i32) {
    %c1_i32 = arith.constant 1 : i32
    %0 = arith.muli %arg0, %c1_i32 : i32
    %1 = arith.addi %0, %arg1 : i32
    %c0_i32 = arith.constant 0 : i32
    %c0_i32_0 = arith.constant 0 : i32
    return %1, %c0_i32 : i32, i32
  }
  func.func @transform_2(%arg0: i32, %arg1: i32) -> (i32, i32) {
    %c1_i32 = arith.constant 1 : i32
    %0 = arith.muli %arg0, %c1_i32 : i32
    %1 = arith.addi %0, %arg1 : i32
    %c0_i32 = arith.constant 0 : i32
    %c0_i32_0 = arith.constant 0 : i32
    return %1, %c0_i32 : i32, i32
  }
  func.func @transform_3(%arg0: i32, %arg1: i32) -> (i32, i32) {
    %c0_i32 = arith.constant 0 : i32
    %c0_i32_0 = arith.constant 0 : i32
    return %arg0, %c0_i32 : i32, i32
  }
  func.func @transform_4(%arg0: i32, %arg1: i32) -> (i32, i32) {
    %c0_i32 = arith.constant 0 : i32
    %c0_i32_0 = arith.constant 0 : i32
    return %arg0, %c0_i32 : i32, i32
  }
  func.func @transform_5(%arg0: i32, %arg1: i32) -> (i32, i32) {
    %c0_i32 = arith.constant 0 : i32
    %c0_i32_0 = arith.constant 0 : i32
    return %arg0, %c0_i32 : i32, i32
  }
}

</mosaic_0001>

<llo_original>
// kernel: dice_partials_pallas.1
$region0: #{dice_partials_pallas.1}
  #allocation0 [shape = 'u32[]', space=smem, size = 0x4, offset = 0x4, fixed_abs, tag = 'smem constant byte address 0x4 - core index']
  #allocation1 [shape = 'u32[144,128]{1,0:T(1,128)}', space=vmem, size = 0x12000, scoped, tag = 'internal scratch']
  #allocation2 [shape = 'f32[1]{0:T(128)S(6)}', space=smem, size = 0x200, scoped, tag = 'scoped memory for dice_partials_pallas.1']
  %s0 = inlined_call_operand.<no memory space> [shape: f32[1], index: 0, kind: input, shape index: {}]
  %s1 = inlined_call_operand.vmem [shape: f32[8,1024], index: 1, kind: input, shape index: {}]
  %s2 = inlined_call_operand.vmem [shape: s8[8,1024], index: 2, kind: input, shape index: {}]
  %s3 = inlined_call_operand.vmem [shape: f32[8,1024], index: 3, kind: output, shape index: {0}]
  %s4 = inlined_call_operand.vmem [shape: f32[8,1024], index: 4, kind: output, shape index: {1}]
  %s5 = inlined_call_operand.vmem [shape: f32[8,1024], index: 5, kind: output, shape index: {2}]
  %6 = xla_tuple %s3, %s4, %s5
  %s7 = sld [smem:[#allocation0]]
  $region42: #{dice_partials_pallas.1} parent=0
    _
  %s9 = ssub.s32 1, %s7
  %s10 = scalar_select 0, %s9, %s7
  %11 = sst [smem:[#allocation2]] %s0
  // Predicated region
  $region2: #{dice_partials_pallas.1} parent=0 // pred_check
    _
  $region3: #{dice_partials_pallas.1} parent=0 // pred_check_branch
    %13 = sbr.rel (0) target = $region5
  $region4: #{dice_partials_pallas.1} parent=0 // pred_region
    _
  $region5: #{dice_partials_pallas.1} parent=0 // pred_fallthru
    _
  // Predicated region
  $region6: #{dice_partials_pallas.1} parent=0 // pred_check
    _
  $region7: #{dice_partials_pallas.1} parent=0 // pred_check_branch
    %15 = sbr.rel (0) target = $region9
  $region8: #{dice_partials_pallas.1} parent=0 // pred_region
    %s16 = sadd.s32 0, 0
    %p17 = scmp.lt.s32.totalorder %s16, 0
    %s18 = scalar_select %p17, %s16, 0
    %s19 = smul.addr %s18, 8
    %s20 = smul.addr %s19, 8
    %s21 = scalar_lea.vmem %s1, %s20
    %s22 = sadd.s32 0, 0
  $region9: #{dice_partials_pallas.1} parent=0 // pred_fallthru
    _
  // Predicated region
  $region10: #{dice_partials_pallas.1} parent=0 // pred_check
    _
  $region11: #{dice_partials_pallas.1} parent=0 // pred_check_branch
    %24 = sbr.rel (0) target = $region13
  $region12: #{dice_partials_pallas.1} parent=0 // pred_region
    %s25 = sadd.s32 0, 0
    %p26 = scmp.lt.s32.totalorder %s25, 0
    %s27 = scalar_select %p26, %s25, 0
    %s28 = smul.addr %s27, 8
    %s29 = smul.addr %s28, 2
    %s30 = scalar_lea.vmem %s2, %s29
    %s31 = sadd.s32 0, 0
  $region13: #{dice_partials_pallas.1} parent=0 // pred_fallthru
    _
  %s32 = sadd.s32 0, 0
  %p33 = scmp.lt.s32.totalorder %s32, 0
  %s34 = scalar_select %p33, %s32, 0
  %s35 = smul.addr %s34, 8
  %s36 = smul.addr %s35, 8
  %s37 = scalar_lea.vmem %s1, %s36
  %s38 = sadd.s32 0, 0
  %p39 = scmp.lt.s32.totalorder %s38, 0
  %s40 = scalar_select %p39, %s38, 0
  %s41 = smul.addr %s40, 8
  %s42 = smul.addr %s41, 2
  %s43 = scalar_lea.vmem %s2, %s42
  %s44 = sadd.s32 0, 0
  %p45 = scmp.lt.s32.totalorder %s44, 0
  %s46 = scalar_select %p45, %s44, 0
  %s47 = smul.addr %s46, 8
  %s48 = smul.addr %s47, 8
  %s49 = scalar_lea.vmem %s1, %s48
  %s50 = sadd.s32 0, 0
  %s51 = sadd.s32 0, 0
  %p52 = scmp.lt.s32.totalorder %s51, 0
  %s53 = scalar_select %p52, %s51, 0
  %s54 = smul.addr %s53, 8
  %s55 = smul.addr %s54, 2
  %s56 = scalar_lea.vmem %s2, %s55
  %s57 = sadd.s32 0, 0
  %p58 = scmp.eq.s32.totalorder 0, 0
  // Predicated region
  $region14: #{dice_partials_pallas.1} parent=0 // pred_check
    %p59 = pneg %p58
  $region15: #{dice_partials_pallas.1} parent=0 // pred_check_branch
    %61 = sbr.rel (%p59) target = $region17
  $region16: #{dice_partials_pallas.1} parent=0 // pred_region
    %62 = vst [vmem:[%s3] sm:$0xff] 0.0
    %63 = vst [vmem:[%s3 + $0x8] sm:$0xff] 0.0
    %64 = vst [vmem:[%s3 + $0x10] sm:$0xff] 0.0
    %65 = vst [vmem:[%s3 + $0x18] sm:$0xff] 0.0
    %66 = vst [vmem:[%s3 + $0x20] sm:$0xff] 0.0
    %67 = vst [vmem:[%s3 + $0x28] sm:$0xff] 0.0
    %68 = vst [vmem:[%s3 + $0x30] sm:$0xff] 0.0
    %69 = vst [vmem:[%s3 + $0x38] sm:$0xff] 0.0
    %70 = vst [vmem:[%s4] sm:$0xff] 0.0
    %71 = vst [vmem:[%s4 + $0x8] sm:$0xff] 0.0
    %72 = vst [vmem:[%s4 + $0x10] sm:$0xff] 0.0
    %73 = vst [vmem:[%s4 + $0x18] sm:$0xff] 0.0
    %74 = vst [vmem:[%s4 + $0x20] sm:$0xff] 0.0
    %75 = vst [vmem:[%s4 + $0x28] sm:$0xff] 0.0
    %76 = vst [vmem:[%s4 + $0x30] sm:$0xff] 0.0
    %77 = vst [vmem:[%s4 + $0x38] sm:$0xff] 0.0
    %78 = vst [vmem:[%s5] sm:$0xff] 0.0
    %79 = vst [vmem:[%s5 + $0x8] sm:$0xff] 0.0
    %80 = vst [vmem:[%s5 + $0x10] sm:$0xff] 0.0
    %81 = vst [vmem:[%s5 + $0x18] sm:$0xff] 0.0
    %82 = vst [vmem:[%s5 + $0x20] sm:$0xff] 0.0
    %83 = vst [vmem:[%s5 + $0x28] sm:$0xff] 0.0
    %84 = vst [vmem:[%s5 + $0x30] sm:$0xff] 0.0
    %85 = vst [vmem:[%s5 + $0x38] sm:$0xff] 0.0
  $region17: #{dice_partials_pallas.1} parent=0 // pred_fallthru
    _
  %s86 = sld [smem:[#allocation2]]
  %v87 = vld [vmem:[%s49] sm:$0xff]
  %v88 = vld [vmem:[%s49 + $0x8] sm:$0xff]
  %v89 = vld [vmem:[%s49 + $0x10] sm:$0xff]
  %v90 = vld [vmem:[%s49 + $0x18] sm:$0xff]
  %v91 = vld [vmem:[%s49 + $0x20] sm:$0xff]
  %v92 = vld [vmem:[%s49 + $0x28] sm:$0xff]
  %v93 = vld [vmem:[%s49 + $0x30] sm:$0xff]
  %v94 = vld [vmem:[%s49 + $0x38] sm:$0xff]
  %v95 = vld [vmem:[%s56] sm:$0xff]
  %v96 = vld [vmem:[%s56 + $0x8] sm:$0xff]
  %v97 = vunpack.c.0.s8 %v95
  %v98 = vunpack.c.1.s8 %v95
  %v99 = vunpack.c.2.s8 %v95
  %v100 = vunpack.c.3.s8 %v95
  %v101 = vunpack.c.0.s8 %v96
  %v102 = vunpack.c.1.s8 %v96
  %v103 = vunpack.c.2.s8 %v96
  %v104 = vunpack.c.3.s8 %v96
  %v105 = vcvt.s32.f32 %v97
  %v106 = vcvt.s32.f32 %v98
  %v107 = vcvt.s32.f32 %v99
  %v108 = vcvt.s32.f32 %v100
  %v109 = vcvt.s32.f32 %v101
  %v110 = vcvt.s32.f32 %v102
  %v111 = vcvt.s32.f32 %v103
  %v112 = vcvt.s32.f32 %v104
  %v113 = vstv %s86
  %vm114 = vcmp.gt.f32.partialorder %v87, %v113
  %vm115 = vcmp.gt.f32.partialorder %v88, %v113
  %vm116 = vcmp.gt.f32.partialorder %v89, %v113
  %vm117 = vcmp.gt.f32.partialorder %v90, %v113
  %vm118 = vcmp.gt.f32.partialorder %v91, %v113
  %vm119 = vcmp.gt.f32.partialorder %v92, %v113
  %vm120 = vcmp.gt.f32.partialorder %v93, %v113
  %vm121 = vcmp.gt.f32.partialorder %v94, %v113
  %v122 = vld [vmem:[%s3] sm:$0xff]
  %v123 = vld [vmem:[%s3 + $0x8] sm:$0xff]
  %v124 = vld [vmem:[%s3 + $0x10] sm:$0xff]
  %v125 = vld [vmem:[%s3 + $0x18] sm:$0xff]
  %v126 = vld [vmem:[%s3 + $0x20] sm:$0xff]
  %v127 = vld [vmem:[%s3 + $0x28] sm:$0xff]
  %v128 = vld [vmem:[%s3 + $0x30] sm:$0xff]
  %v129 = vld [vmem:[%s3 + $0x38] sm:$0xff]
  %v130 = vsel %vm114, %v105, 0.0
  %v131 = vsel %vm115, %v106, 0.0
  %v132 = vsel %vm116, %v107, 0.0
  %v133 = vsel %vm117, %v108, 0.0
  %v134 = vsel %vm118, %v109, 0.0
  %v135 = vsel %vm119, %v110, 0.0
  %v136 = vsel %vm120, %v111, 0.0
  %v137 = vsel %vm121, %v112, 0.0
  %v138 = vadd.f32 %v130, 0.0
  %v139 = vadd.f32 %v131, 0.0
  %v140 = vadd.f32 %v132, 0.0
  %v141 = vadd.f32 %v133, 0.0
  %v142 = vadd.f32 %v134, 0.0
  %v143 = vadd.f32 %v135, 0.0
  %v144 = vadd.f32 %v136, 0.0
  %v145 = vadd.f32 %v137, 0.0
  %v146 = vadd.f32 %v122, %v138
  %v147 = vadd.f32 %v123, %v139
  %v148 = vadd.f32 %v124, %v140
  %v149 = vadd.f32 %v125, %v141
  %v150 = vadd.f32 %v126, %v142
  %v151 = vadd.f32 %v127, %v143
  %v152 = vadd.f32 %v128, %v144
  %v153 = vadd.f32 %v129, %v145
  %154 = vst [vmem:[%s3] sm:$0xff] %v146
  %155 = vst [vmem:[%s3 + $0x8] sm:$0xff] %v147
  %156 = vst [vmem:[%s3 + $0x10] sm:$0xff] %v148
  %157 = vst [vmem:[%s3 + $0x18] sm:$0xff] %v149
  %158 = vst [vmem:[%s3 + $0x20] sm:$0xff] %v150
  %159 = vst [vmem:[%s3 + $0x28] sm:$0xff] %v151
  %160 = vst [vmem:[%s3 + $0x30] sm:$0xff] %v152
  %161 = vst [vmem:[%s3 + $0x38] sm:$0xff] %v153
  %v162 = vld [vmem:[%s4] sm:$0xff]
  %v163 = vld [vmem:[%s4 + $0x8] sm:$0xff]
  %v164 = vld [vmem:[%s4 + $0x10] sm:$0xff]
  %v165 = vld [vmem:[%s4 + $0x18] sm:$0xff]
  %v166 = vld [vmem:[%s4 + $0x20] sm:$0xff]
  %v167 = vld [vmem:[%s4 + $0x28] sm:$0xff]
  %v168 = vld [vmem:[%s4 + $0x30] sm:$0xff]
  %v169 = vld [vmem:[%s4 + $0x38] sm:$0xff]
  %v170 = vsel %vm114, 1.0, 0.0
  %v171 = vsel %vm115, 1.0, 0.0
  %v172 = vsel %vm116, 1.0, 0.0
  %v173 = vsel %vm117, 1.0, 0.0
  %v174 = vsel %vm118, 1.0, 0.0
  %v175 = vsel %vm119, 1.0, 0.0
  %v176 = vsel %vm120, 1.0, 0.0
  %v177 = vsel %vm121, 1.0, 0.0
  %v178 = vadd.f32 %v170, 0.0
  %v179 = vadd.f32 %v171, 0.0
  %v180 = vadd.f32 %v172, 0.0
  %v181 = vadd.f32 %v173, 0.0
  %v182 = vadd.f32 %v174, 0.0
  %v183 = vadd.f32 %v175, 0.0
  %v184 = vadd.f32 %v176, 0.0
  %v185 = vadd.f32 %v177, 0.0
  %v186 = vadd.f32 %v162, %v178
  %v187 = vadd.f32 %v163, %v179
  %v188 = vadd.f32 %v164, %v180
  %v189 = vadd.f32 %v165, %v181
  %v190 = vadd.f32 %v166, %v182
  %v191 = vadd.f32 %v167, %v183
  %v192 = vadd.f32 %v168, %v184
  %v193 = vadd.f32 %v169, %v185
  %194 = vst [vmem:[%s4] sm:$0xff] %v186
  %195 = vst [vmem:[%s4 + $0x8] sm:$0xff] %v187
  %196 = vst [vmem:[%s4 + $0x10] sm:$0xff] %v188
  %197 = vst [vmem:[%s4 + $0x18] sm:$0xff] %v189
  %198 = vst [vmem:[%s4 + $0x20] sm:$0xff] %v190
  %199 = vst [vmem:[%s4 + $0x28] sm:$0xff] %v191
  %200 = vst [vmem:[%s4 + $0x30] sm:$0xff] %v192
  %201 = vst [vmem:[%s4 + $0x38] sm:$0xff] %v193
  %v202 = vld [vmem:[%s5] sm:$0xff]
  %v203 = vld [vmem:[%s5 + $0x8] sm:$0xff]
  %v204 = vld [vmem:[%s5 + $0x10] sm:$0xff]
  %v205 = vld [vmem:[%s5 + $0x18] sm:$0xff]
  %v206 = vld [vmem:[%s5 + $0x20] sm:$0xff]
  %v207 = vld [vmem:[%s5 + $0x28] sm:$0xff]
  %v208 = vld [vmem:[%s5 + $0x30] sm:$0xff]
  %v209 = vld [vmem:[%s5 + $0x38] sm:$0xff]
  %v210 = vadd.f32 %v105, 0.0
  %v211 = vadd.f32 %v106, 0.0
  %v212 = vadd.f32 %v107, 0.0
  %v213 = vadd.f32 %v108, 0.0
  %v214 = vadd.f32 %v109, 0.0
  %v215 = vadd.f32 %v110, 0.0
  %v216 = vadd.f32 %v111, 0.0
  %v217 = vadd.f32 %v112, 0.0
  %v218 = vadd.f32 %v202, %v210
  %v219 = vadd.f32 %v203, %v211
  %v220 = vadd.f32 %v204, %v212
  %v221 = vadd.f32 %v205, %v213
  %v222 = vadd.f32 %v206, %v214
  %v223 = vadd.f32 %v207, %v215
  %v224 = vadd.f32 %v208, %v216
  %v225 = vadd.f32 %v209, %v217
  %226 = vst [vmem:[%s5] sm:$0xff] %v218
  %227 = vst [vmem:[%s5 + $0x8] sm:$0xff] %v219
  %228 = vst [vmem:[%s5 + $0x10] sm:$0xff] %v220
  %229 = vst [vmem:[%s5 + $0x18] sm:$0xff] %v221
  %230 = vst [vmem:[%s5 + $0x20] sm:$0xff] %v222
  %231 = vst [vmem:[%s5 + $0x28] sm:$0xff] %v223
  %232 = vst [vmem:[%s5 + $0x30] sm:$0xff] %v224
  %233 = vst [vmem:[%s5 + $0x38] sm:$0xff] %v225
  // Predicated region
  $region18: #{dice_partials_pallas.1} parent=0 // pred_check
    _
  $region19: #{dice_partials_pallas.1} parent=0 // pred_check_branch
    %235 = sbr.rel (0) target = $region21
  $region20: #{dice_partials_pallas.1} parent=0 // pred_region
    _
  $region21: #{dice_partials_pallas.1} parent=0 // pred_fallthru
    _
  // Predicated region
  $region22: #{dice_partials_pallas.1} parent=0 // pred_check
    _
  $region23: #{dice_partials_pallas.1} parent=0 // pred_check_branch
    %237 = sbr.rel (0) target = $region25
  $region24: #{dice_partials_pallas.1} parent=0 // pred_region
    _
  $region25: #{dice_partials_pallas.1} parent=0 // pred_fallthru
    _
  // Predicated region
  $region26: #{dice_partials_pallas.1} parent=0 // pred_check
    _
  $region27: #{dice_partials_pallas.1} parent=0 // pred_check_branch
    %239 = sbr.rel (0) target = $region29
  $region28: #{dice_partials_pallas.1} parent=0 // pred_region
    _
  $region29: #{dice_partials_pallas.1} parent=0 // pred_fallthru
    _
  // Predicated region
  $region30: #{dice_partials_pallas.1} parent=0 // pred_check
    _
  $region31: #{dice_partials_pallas.1} parent=0 // pred_check_branch
    %241 = sbr.rel (0) target = $region33
  $region32: #{dice_partials_pallas.1} parent=0 // pred_region
    _
  $region33: #{dice_partials_pallas.1} parent=0 // pred_fallthru
    _
  // Predicated region
  $region34: #{dice_partials_pallas.1} parent=0 // pred_check
    _
  $region35: #{dice_partials_pallas.1} parent=0 // pred_check_branch
    %243 = sbr.rel (0) target = $region37
  $region36: #{dice_partials_pallas.1} parent=0 // pred_region
    _
  $region37: #{dice_partials_pallas.1} parent=0 // pred_fallthru
    _
  // Predicated region
  $region38: #{dice_partials_pallas.1} parent=0 // pred_check
    _
  $region39: #{dice_partials_pallas.1} parent=0 // pred_check_branch
    %245 = sbr.rel (0) target = $region41
  $region40: #{dice_partials_pallas.1} parent=0 // pred_region
    _
  $region41: #{dice_partials_pallas.1} parent=0 // pred_fallthru
    _

</llo_original>
